<compile_context>
chip_gen: v7x
topology: tpu7x:2x2x1
jax: 0.10.0
libtpu: 0.0.40
codegen_flags: <defaults>
</compile_context>

<pallas_src>
import functools

import jax
import jax.numpy as jnp
from jax.experimental import pallas as pl
from jax.experimental.pallas import tpu as pltpu


# ----------------------------------------------------------------------------
# helpers
# ----------------------------------------------------------------------------

def _round_up(x, m):
    return (x + m - 1) // m * m


def _pick_tile(T, tile):
    """Token tile TT (multiple of 8) and padded token count."""
    TT = min(tile, _round_up(T, 8))
    return TT, _round_up(T, TT)


def _layernorm(x, g, b, eps=1e-5):
    mu = jnp.mean(x, axis=-1, keepdims=True)
    var = jnp.mean(jnp.square(x - mu), axis=-1, keepdims=True)
    return (x - mu) * jax.lax.rsqrt(var + eps) * g + b


# ----------------------------------------------------------------------------
# Pallas kernels
# ----------------------------------------------------------------------------

def _ctx_proj_kernel(x_ref, w_ref, b_ref, o_ref, *, relu_lo, relu_hi):
    """Fused context projection: one [TT,256]x[256,512] matmul.

    Output columns: [0:128] proj->tanh (net_fg), [128:256] proj->relu (inp),
    [256:384] proj_bg->tanh, [384:512] proj_am->tanh.
    """
    f32 = jnp.float32
    x = x_ref[...].astype(f32)
    w = w_ref[...].astype(f32)
    y = jnp.dot(x, w, preferred_element_type=f32) + b_ref[...].astype(f32)
    col = jax.lax.broadcasted_iota(jnp.int32, y.shape, 1)
    relu_cols = (col >= relu_lo) & (col < relu_hi)
    o = jnp.where(relu_cols, jnp.maximum(y, 0.0), jnp.tanh(y))
    o_ref[...] = o.astype(o_ref.dtype)


def _decode_cost_kernel(cost_ref, pe_ref, mem_ref,
                        w1_ref, b1_ref, w2_ref, b2_ref,
                        ln1g_ref, ln1b_ref,
                        wq_ref, bq_ref, wkv_ref, bkv_ref,
                        wp_ref, bp_ref,
                        ln2g_ref, ln2b_ref,
                        wf1_ref, bf1_ref, wf2_ref, bf2_ref,
                        x_ref, kv_ref,
                        *, num_heads, scale):
    """flow_token_encoder + CrossAttentionLayer.forward for one token tile.

      query = Conv(cost) -> GELU -> Conv(cost)        (flow_token_encoder, fused)
      q = Wq(LN1(query) + pe)                         (flow_or_pe == 'and')
      [k||v] = Wkv(memory)                            (fused k/v projection)
      x = query + Wp(MHA(q, k, v))                    (short cut, drops identity)
      x = x + FFN(LN2(x))
    """
    f32 = jnp.float32
    TT, M, Cm = mem_ref.shape
    C = wq_ref.shape[0]
    D = C // num_heads

    # ---- flow_token_encoder (query never leaves VMEM) ----
    cost = cost_ref[...].astype(f32)
    h = jnp.dot(cost, w1_ref[...].astype(f32), preferred_element_type=f32) + b1_ref[...]
    # TODO(synk): torch nn.GELU() default is exact (erf) GELU; tanh approx used here.
    h = jax.nn.gelu(h, approximate=True)
    query = jnp.dot(h, w2_ref[...].astype(f32), preferred_element_type=f32) + b2_ref[...]

    # ---- LN1 + q projection ----
    qn = _layernorm(query, ln1g_ref[...], ln1b_ref[...])
    q = jnp.dot(qn + pe_ref[...].astype(f32), wq_ref[...].astype(f32),
                preferred_element_type=f32) + bq_ref[...]

    # ---- fused k/v projection of memory ----
    mem2 = mem_ref[...].astype(f32).reshape(TT * M, Cm)
    kv2 = jnp.dot(mem2, wkv_ref[...].astype(f32), preferred_element_type=f32) + bkv_ref[...]
    kv3 = kv2.reshape(TT, M, 2 * C)             # [TT, M, 2C]
    kv_ref[...] = kv3.astype(kv_ref.dtype)      # single fused k||v writeback
    k3 = kv3[..., :C]                           # [TT, M, C]
    v3 = kv3[..., C:]                           # [TT, M, C]

    # ---- multi-head attention, vectorized over heads ----
    # head_pool[c, h] = 1 iff channel c belongs to head h (and its transpose).
    c_idx = jax.lax.broadcasted_iota(jnp.int32, (C, num_heads), 0)
    h_idx = jax.lax.broadcasted_iota(jnp.int32, (C, num_heads), 1)
    head_pool = (c_idx // D == h_idx).astype(f32)          # [C, H]
    h2 = jax.lax.broadcasted_iota(jnp.int32, (num_heads, C), 0)
    c2 = jax.lax.broadcasted_iota(jnp.int32, (num_heads, C), 1)
    head_expand = (c2 // D == h2).astype(f32)              # [H, C]

    prod = q[:, None, :] * k3                                          # [TT, M, C]
    dots = jnp.dot(prod.reshape(TT * M, C), head_pool,
                   preferred_element_type=f32).reshape(TT, M, num_heads) * scale
    dots = dots - jnp.max(dots, axis=1, keepdims=True)
    e = jnp.exp(dots)
    denom = jnp.sum(e, axis=1, keepdims=True)
    attn = e * pl.reciprocal(denom, approx=True)                       # [TT, M, H]
    attn_c = jnp.dot(attn.reshape(TT * M, num_heads), head_expand,
                     preferred_element_type=f32).reshape(TT, M, C)     # [TT, M, C]
    attn_out = jnp.sum(attn_c * v3, axis=1)                            # [TT, C]

    # ---- output projection + residual (proj_drop = identity) ----
    x = jnp.dot(attn_out, wp_ref[...].astype(f32), preferred_element_type=f32) + bp_ref[...]
    x = query + x

    # ---- FFN: Linear -> GELU -> Linear, residual (drop_path = identity) ----
    xn = _layernorm(x, ln2g_ref[...], ln2b_ref[...])
    h1 = jnp.dot(xn, wf1_ref[...].astype(f32), preferred_element_type=f32) + bf1_ref[...]
    # TODO(synk): torch nn.GELU() default is exact (erf) GELU; tanh approx used here.
    h1 = jax.nn.gelu(h1, approximate=True)
    x = x + jnp.dot(h1, wf2_ref[...].astype(f32), preferred_element_type=f32) + bf2_ref[...]
    x_ref[...] = x.astype(x_ref.dtype)


# ----------------------------------------------------------------------------
# Pallas wrappers
# ----------------------------------------------------------------------------

def fused_context_proj(ctx_tok, w_fused, b_fused, *, tile=256):
    """ctx_tok: [T, 256] -> [T, 512] (net_fg|inp|net_bg|net_am, activations applied)."""
    T, Cin = ctx_tok.shape
    Cout = w_fused.shape[1]
    TT, T_pad = _pick_tile(T, tile)
    if T_pad != T:
        ctx_tok = jnp.pad(ctx_tok, ((0, T_pad - T), (0, 0)))

    flops = 2 * T_pad * Cin * Cout
    bytes_accessed = 4 * (T_pad * Cin + Cin * Cout + T_pad * Cout)
    out = pl.pallas_call(
        functools.partial(_ctx_proj_kernel, relu_lo=128, relu_hi=256),
        out_shape=jax.ShapeDtypeStruct((T_pad, Cout), ctx_tok.dtype),
        grid=(T_pad // TT,),
        in_specs=[pl.BlockSpec((TT, Cin), lambda i: (i, 0)),
                  pl.BlockSpec((Cin, Cout), lambda i: (0, 0)),
                  pl.BlockSpec((1, Cout), lambda i: (0, 0))],
        out_specs=pl.BlockSpec((TT, Cout), lambda i: (i, 0)),
        compiler_params=pltpu.CompilerParams(dimension_semantics=("parallel",)),
        cost_estimate=pl.CostEstimate(flops=flops, transcendentals=T_pad * Cout,
                                      bytes_accessed=bytes_accessed),
    )(ctx_tok, w_fused, b_fused.reshape(1, Cout))
    return out[:T]


def decode_cost_fg(cost_tok, pe_tok, memory, fte, attn, *, num_heads=8, tile=256):
    """Fused flow_token_encoder + CrossAttentionLayer.

    cost_tok: [T, 81*heads]; pe_tok: [T, C]; memory: [T, M, Cm]
    returns (x [T, C], k [T, M, C], v [T, M, C])
    """
    T, Ccost = cost_tok.shape
    _, M, Cm = memory.shape
    C = attn["wq"].shape[0]
    TT, T_pad = _pick_tile(T, tile)
    if T_pad != T:
        pad = T_pad - T
        cost_tok = jnp.pad(cost_tok, ((0, pad), (0, 0)))
        pe_tok = jnp.pad(pe_tok, ((0, pad), (0, 0)))
        memory = jnp.pad(memory, ((0, pad), (0, 0), (0, 0)))

    D = C // num_heads
    scale = float(D) ** -0.5
    r2 = lambda i: (0, 0)
    tok2 = lambda i: (i, 0)
    tok3 = lambda i: (i, 0, 0)
    b = lambda v: v.reshape(1, -1)

    flops = (2 * T_pad * (Ccost * C + C * C)            # flow_token_encoder
             + 2 * T_pad * M * Cm * 2 * C               # fused k/v projection
             + 4 * T_pad * M * C                        # attention score + weighted sum
             + 2 * T_pad * C * C * 4)                   # q, proj, ffn1, ffn2
    transcendentals = T_pad * (2 * C + M * num_heads)
    bytes_accessed = 4 * (T_pad * (Ccost + 2 * C) + T_pad * M * (Cm + 2 * C)
                          + Ccost * C + Cm * 2 * C + 6 * C * C)

    kernel = functools.partial(_decode_cost_kernel, num_heads=num_heads, scale=scale)
    x, kv = pl.pallas_call(
        kernel,
        out_shape=(jax.ShapeDtypeStruct((T_pad, C), jnp.float32),
                   jax.ShapeDtypeStruct((T_pad, M, 2 * C), jnp.float32)),
        grid=(T_pad // TT,),
        in_specs=[
            pl.BlockSpec((TT, Ccost), tok2),            # cost tokens (fte input)
            pl.BlockSpec((TT, C), tok2),                # positional encoding
            pl.BlockSpec((TT, M, Cm), tok3),            # memory tokens
            pl.BlockSpec((Ccost, C), r2),               # fte W1
            pl.BlockSpec((1, C), r2),                   # fte b1
            pl.BlockSpec((C, C), r2),                   # fte W2
            pl.BlockSpec((1, C), r2),                   # fte b2
            pl.BlockSpec((1, C), r2),                   # ln1 gamma
            pl.BlockSpec((1, C), r2),                   # ln1 beta
            pl.BlockSpec((C, C), r2),                   # Wq
            pl.BlockSpec((1, C), r2),                   # bq
            pl.BlockSpec((Cm, 2 * C), r2),              # Wk||Wv (fused)
            pl.BlockSpec((1, 2 * C), r2),               # bk||bv
            pl.BlockSpec((C, C), r2),                   # Wproj
            pl.BlockSpec((1, C), r2),                   # bproj
            pl.BlockSpec((1, C), r2),                   # ln2 gamma
            pl.BlockSpec((1, C), r2),                   # ln2 beta
            pl.BlockSpec((C, C), r2),                   # ffn W1
            pl.BlockSpec((1, C), r2),                   # ffn b1
            pl.BlockSpec((C, C), r2),                   # ffn W2
            pl.BlockSpec((1, C), r2),                   # ffn b2
        ],
        out_specs=(pl.BlockSpec((TT, C), tok2),
                   pl.BlockSpec((TT, M, 2 * C), tok3)),
        compiler_params=pltpu.CompilerParams(dimension_semantics=("parallel",)),
        cost_estimate=pl.CostEstimate(flops=flops, transcendentals=transcendentals,
                                      bytes_accessed=bytes_accessed),
    )(cost_tok, pe_tok, memory,
      fte["w1"], b(fte["b1"]), fte["w2"], b(fte["b2"]),
      b(attn["ln1_g"]), b(attn["ln1_b"]),
      attn["wq"], b(attn["bq"]), attn["wkv"], b(attn["bkv"]),
      attn["wp"], b(attn["bp"]),
      b(attn["ln2_g"]), b(attn["ln2_b"]),
      attn["wf1"], b(attn["bf1"]), attn["wf2"], b(attn["bf2"]))
    x = x[:T]
    kv = kv[:T]
    return x, kv[..., :C], kv[..., C:]


# ----------------------------------------------------------------------------
# Plain-JAX glue (coords grids, positional encoding, bilinear gather)
# ----------------------------------------------------------------------------

def coords_grid(batch, ht, wd):
    y, x = jnp.meshgrid(jnp.arange(ht), jnp.arange(wd), indexing="ij")
    coords = jnp.stack([x, y], axis=0).astype(jnp.float32)   # ch0 = x, ch1 = y
    return jnp.broadcast_to(coords[None], (batch, 2, ht, wd))


def initialize_flow(img):
    N, _, H, W = img.shape
    return coords_grid(N, H, W), coords_grid(N, H, W)


def linear_position_embedding_sine(x, dim=128, normalize_factor=1.0 / 200):
    """x: [..., 2] -> [..., dim].  FlowFormer uses the literal 3.14 (not math.pi)."""
    freq = jnp.linspace(0, dim // 4 - 1, dim // 4)
    xs = x[..., -2:-1] * freq * 3.14 * normalize_factor
    ys = x[..., -1:] * freq * 3.14 * normalize_factor
    return jnp.concatenate([jnp.sin(xs), jnp.cos(xs), jnp.sin(ys), jnp.cos(ys)], axis=-1)


def bilinear_sampler(img, coords):
    """F.grid_sample(bilinear, zeros padding, align_corners=True) on pixel coords.
    img: [N, C, H, W], coords: [N, Hs, Ws, 2] (x, y)."""
    N, C, H, W = img.shape
    x, y = coords[..., 0], coords[..., 1]
    x0, y0 = jnp.floor(x), jnp.floor(y)
    x1, y1 = x0 + 1, y0 + 1
    wa = (x1 - x) * (y1 - y)
    wb = (x1 - x) * (y - y0)
    wc = (x - x0) * (y1 - y)
    wd = (x - x0) * (y - y0)
    flat = img.reshape(N, C, H * W)

    def gather(ix, iy):
        valid = (ix >= 0) & (ix <= W - 1) & (iy >= 0) & (iy <= H - 1)
        ixc = jnp.clip(ix, 0, W - 1).astype(jnp.int32)
        iyc = jnp.clip(iy, 0, H - 1).astype(jnp.int32)
        idx = (iyc * W + ixc).reshape(N, 1, -1)
        idx = jnp.broadcast_to(idx, (N, C, idx.shape[-1]))
        g = jnp.take_along_axis(flat, idx, axis=2).reshape(N, C, *ix.shape[1:])
        return g * valid[:, None].astype(img.dtype)

    out = (gather(x0, y0) * wa[:, None] + gather(x0, y1) * wb[:, None]
           + gather(x1, y0) * wc[:, None] + gather(x1, y1) * wd[:, None])
    return out


def encode_flow_token(cost_maps, coords, r=4):
    """cost_maps: [B*H1*W1, heads, H2, W2]; coords: [B, 2, H1, W1] -> [B, heads*(2r+1)^2, H1, W1]"""
    coords = coords.transpose(0, 2, 3, 1)                       # [B, H1, W1, 2]
    B, h1, w1, _ = coords.shape
    dx = jnp.linspace(-r, r, 2 * r + 1)
    dy = jnp.linspace(-r, r, 2 * r + 1)
    dyy, dxx = jnp.meshgrid(dy, dx, indexing="ij")
    delta = jnp.stack([dyy, dxx], axis=-1)                      # matches torch.meshgrid(dy, dx)
    centroid = coords.reshape(B * h1 * w1, 1, 1, 2)
    samp = centroid + delta[None]
    corr = bilinear_sampler(cost_maps, samp)                    # [BHW, heads, 2r+1, 2r+1]
    corr = corr.reshape(B, h1, w1, -1).transpose(0, 3, 1, 2)
    return corr


def nchw_to_tokens(x):
    B, C, H, W = x.shape
    return x.transpose(0, 2, 3, 1).reshape(B * H * W, C)


def tokens_to_nchw(x, B, H, W):
    C = x.shape[-1]
    return x.reshape(B, H, W, C).transpose(0, 3, 1, 2)


# ----------------------------------------------------------------------------
# MemoryDecoder (partial: the cost-decoding hot path)
# ----------------------------------------------------------------------------

class MemoryDecoderPallas:
    def __init__(self, key, *, query_latent_dim=32, cost_latent_dim=32,
                 encoder_latent_dim=256, cost_heads_num=1, num_heads=8, tile=256):
        self.dim = query_latent_dim
        self.cost_latent_dim = cost_latent_dim
        self.cost_heads_num = cost_heads_num
        self.num_heads = num_heads
        self.tile = tile

        def dense(k, fan_in, fan_out):
            kw, kb = jax.random.split(k)
            w = 0.02 * jax.random.normal(kw, (fan_in, fan_out), jnp.float32)
            b = 0.01 * jax.random.normal(kb, (fan_out,), jnp.float32)
            return w, b

        ks = jax.random.split(key, 12)
        d = self.dim
        # proj = Conv2d(encoder_latent_dim, 256, 1); proj_bg/proj_am = Conv2d(256, 128, 1)
        proj_w, proj_b = dense(ks[0], encoder_latent_dim, 256)
        proj_bg_w, proj_bg_b = dense(ks[1], encoder_latent_dim, 128)
        proj_am_w, proj_am_b = dense(ks[2], encoder_latent_dim, 128)
        # fused [256, 512] weight: net_fg(tanh) | inp(relu) | net_bg(tanh) | net_am(tanh)
        self.ctx_w = jnp.concatenate([proj_w, proj_bg_w, proj_am_w], axis=1)
        self.ctx_b = jnp.concatenate([proj_b, proj_bg_b, proj_am_b], axis=0)

        # flow_token_encoder = Conv2d(81*heads, dim, 1), GELU, Conv2d(dim, dim, 1)
        w1, b1 = dense(ks[3], 81 * cost_heads_num, d)
        w2, b2 = dense(ks[4], d, d)
        self.fte_params = dict(w1=w1, b1=b1, w2=w2, b2=b2)

        # CrossAttentionLayer (qk_dim = v_dim = query_token_dim = d, tgt = cost_latent_dim)
        wq, bq = dense(ks[5], d, d)
        wk, bk = dense(ks[6], cost_latent_dim, d)
        wv, bv = dense(ks[7], cost_latent_dim, d)
        wp, bp = dense(ks[8], d, d)
        wf1, bf1 = dense(ks[9], d, d)
        wf2, bf2 = dense(ks[10], d, d)
        self.attn_params = dict(
            ln1_g=jnp.ones((d,), jnp.float32), ln1_b=jnp.zeros((d,), jnp.float32),
            wq=wq, bq=bq,
            wkv=jnp.concatenate([wk, wv], axis=1),       # fused Wk||Wv
            bkv=jnp.concatenate([bk, bv], axis=0),
            wp=wp, bp=bp,
            ln2_g=jnp.ones((d,), jnp.float32), ln2_b=jnp.zeros((d,), jnp.float32),
            wf1=wf1, bf1=bf1, wf2=wf2, bf2=bf2)
        # TODO(synk): pretrain_head, combine_*, *_logits heads, update blocks (Basic/GMA),
        # GMA Attention and `labels` class counts are external modules not provided.

    def forward(self, cost_memory, context, data):
        cost_maps = data["cost_maps"]
        B, _, H1, W1 = context.shape
        coords0, coords1_fg = initialize_flow(context)

        # --- fused context projections (one kernel, context read once) ---
        ctx_tok = nchw_to_tokens(context)
        fused = fused_context_proj(ctx_tok, self.ctx_w, self.ctx_b, tile=self.tile)
        net_fg = tokens_to_nchw(fused[:, 0:128], B, H1, W1)     # tanh(proj[:, :128])
        inp = tokens_to_nchw(fused[:, 128:256], B, H1, W1)      # relu(proj[:, 128:])
        net_bg = tokens_to_nchw(fused[:, 256:384], B, H1, W1)   # tanh(proj_bg)
        net_am = tokens_to_nchw(fused[:, 384:512], B, H1, W1)   # tanh(proj_am)
        # TODO(synk): self.att (GMA Attention) skipped -- cfg.gma=None path.

        # --- one decoder-depth iteration, foreground branch (cost-decoding hot path) ---
        cost_fg = encode_flow_token(cost_maps, coords1_fg, r=4)          # gather glue (JAX)
        # query_coord = coords1 (cfg.use_rpe = False), pe = 'linear', flow_or_pe = 'and'
        qc = coords1_fg.reshape(B, 2, H1 * W1).transpose(0, 2, 1).reshape(B * H1 * W1, 1, 2)
        pe_tok = linear_position_embedding_sine(qc, dim=self.dim)[:, 0, :]

        x_tok, key_t, val_t = decode_cost_fg(
            nchw_to_tokens(cost_fg), pe_tok, cost_memory,
            self.fte_params, self.attn_params,
            num_heads=self.num_heads, tile=self.tile)
        cost_global = tokens_to_nchw(x_tok, B, H1, W1)                   # [B, dim, H1, W1]
        corr_fg = jnp.concatenate([cost_global, cost_fg], axis=1)
        # TODO(synk): update_block / combine_bg / combine_am* / object & amodal logit heads /
        # upsample_field consume BasicUpdateBlock|GMAUpdateBlock outputs which are not provided.

        return dict(corr_fg=corr_fg, net_fg=net_fg, inp=inp, net_bg=net_bg, net_am=net_am,
                    key=key_t, value=val_t, flow_fg=coords1_fg - coords0)


# ----------------------------------------------------------------------------

if __name__ == "__main__":
    root = jax.random.PRNGKey(0)
    k_param, k_ctx, k_mem, k_cost = jax.random.split(root, 4)

    B, H1, W1 = 1, 8, 8
    encoder_latent_dim = 256          # proj_bg/proj_am are Conv2d(256, 128, 1) on context
    query_latent_dim = 32
    cost_latent_dim = 32
    cost_heads_num = 1
    M = 16                            # H2' * W2' memory tokens per query position
    T = B * H1 * W1

    decoder = MemoryDecoderPallas(k_param,
                                  query_latent_dim=query_latent_dim,
                                  cost_latent_dim=cost_latent_dim,
                                  encoder_latent_dim=encoder_latent_dim,
                                  cost_heads_num=cost_heads_num)

    context = jax.random.normal(k_ctx, (B, encoder_latent_dim, H1, W1), jnp.float32)
    cost_memory = jax.random.normal(k_mem, (T, M, cost_latent_dim), jnp.float32)
    cost_maps = jax.random.normal(k_cost, (T, cost_heads_num, H1, W1), jnp.float32)

    out = decoder.forward(cost_memory, context, {"cost_maps": cost_maps})
    jax.tree_util.tree_map(jax.block_until_ready, out)

    # simple sanity on shapes
    assert out["corr_fg"].shape == (B, query_latent_dim + 81 * cost_heads_num, H1, W1)
    assert out["net_fg"].shape == (B, 128, H1, W1)
    assert out["inp"].shape == (B, 128, H1, W1)
    assert out["key"].shape == (T, M, query_latent_dim)
    assert out["value"].shape == (T, M, query_latent_dim)
    print("KERNEL_OK")
</pallas_src>

<mosaic_0001>
module attributes {stable_mosaic.version = 11 : i64} {
  func.func @_ctx_proj_kernel(%arg0: i32, %arg1: memref<64x256xf32, #tpu.memory_space<vmem>>, %arg2: memref<256x512xf32, #tpu.memory_space<vmem>>, %arg3: memref<1x512xf32, #tpu.memory_space<vmem>>, %arg4: memref<64x512xf32, #tpu.memory_space<vmem>>) attributes {dimension_semantics = [#tpu.dimension_semantics<parallel>], iteration_bounds = array<i64: 1>, scalar_prefetch = 0 : i64, scratch_operands = 0 : i64, tpu.core_type = #tpu.core_type<tc>, window_params = [{transform_indices = @transform_0, window_bounds = array<i64: 64, 256>}, {pipeline_mode = #tpu.pipeline_mode<synchronous>, transform_indices = @transform_1, window_bounds = array<i64: 256, 512>}, {pipeline_mode = #tpu.pipeline_mode<synchronous>, transform_indices = @transform_2, window_bounds = array<i64: 1, 512>}, {transform_indices = @transform_3, window_bounds = array<i64: 64, 512>}]} {
    %c0 = arith.constant 0 : index
    %c0_0 = arith.constant 0 : index
    %0 = vector.load %arg1[%c0, %c0_0] : memref<64x256xf32, #tpu.memory_space<vmem>>, vector<64x256xf32>
    %c0_1 = arith.constant 0 : index
    %c0_2 = arith.constant 0 : index
    %1 = vector.load %arg2[%c0_1, %c0_2] : memref<256x512xf32, #tpu.memory_space<vmem>>, vector<256x512xf32>
    %cst = arith.constant dense<0.000000e+00> : vector<64x512xf32>
    %2 = tpu.matmul %0, %1, %cst {dimension_numbers = #tpu.dot_dimension_numbers<[1], [0], [0], [1], [0, 0, 1, 1], [], []>} : vector<64x256xf32>, vector<256x512xf32>, vector<64x512xf32> -> vector<64x512xf32>
    %c0_3 = arith.constant 0 : index
    %c0_4 = arith.constant 0 : index
    %3 = vector.load %arg3[%c0_3, %c0_4] : memref<1x512xf32, #tpu.memory_space<vmem>>, vector<1x512xf32>
    %4 = vector.broadcast %3 : vector<1x512xf32> to vector<64x512xf32>
    %5 = arith.addf %2, %4 : vector<64x512xf32>
    %6 = tpu.iota {dimensions = array<i32: 1>} : vector<64x512xi32>
    %c128_i32 = arith.constant 128 : i32
    %7 = vector.broadcast %c128_i32 : i32 to vector<64x512xi32>
    %8 = arith.cmpi sge, %6, %7 : vector<64x512xi32>
    %c256_i32 = arith.constant 256 : i32
    %9 = vector.broadcast %c256_i32 : i32 to vector<64x512xi32>
    %10 = arith.cmpi slt, %6, %9 : vector<64x512xi32>
    %11 = arith.andi %8, %10 : vector<64x512xi1>
    %cst_5 = arith.constant 0.000000e+00 : f32
    %12 = vector.broadcast %cst_5 : f32 to vector<64x512xf32>
    %13 = arith.maximumf %5, %12 : vector<64x512xf32>
    %14 = math.tanh %5 : vector<64x512xf32>
    %15 = arith.select %11, %13, %14 : vector<64x512xi1>, vector<64x512xf32>
    %c0_6 = arith.constant 0 : index
    %c0_7 = arith.constant 0 : index
    %16 = vector.load %arg4[%c0_6, %c0_7] : memref<64x512xf32, #tpu.memory_space<vmem>>, vector<64x512xf32>
    tpu.vector_store %arg4[%c0_6, %c0_7], %15 {strides = array<i32>} : memref<64x512xf32, #tpu.memory_space<vmem>>, vector<64x512xf32>,
    return
  }
  func.func @transform_0(%arg0: i32) -> (i32, i32) {
    %c0_i32 = arith.constant 0 : i32
    %c0_i32_0 = arith.constant 0 : i32
    return %arg0, %c0_i32 : i32, i32
  }
  func.func @transform_1(%arg0: i32) -> (i32, i32) {
    %c0_i32 = arith.constant 0 : i32
    %c0_i32_0 = arith.constant 0 : i32
    %c0_i32_1 = arith.constant 0 : i32
    return %c0_i32, %c0_i32_0 : i32, i32
  }
  func.func @transform_2(%arg0: i32) -> (i32, i32) {
    %c0_i32 = arith.constant 0 : i32
    %c0_i32_0 = arith.constant 0 : i32
    %c0_i32_1 = arith.constant 0 : i32
    return %c0_i32, %c0_i32_0 : i32, i32
  }
  func.func @transform_3(%arg0: i32) -> (i32, i32) {
    %c0_i32 = arith.constant 0 : i32
    %c0_i32_0 = arith.constant 0 : i32
    return %arg0, %c0_i32 : i32, i32
  }
}

</mosaic_0001>

<llo_original>
// kernel: tpu_custom_call.1
$region0: #{tpu_custom_call.1}
  #allocation0 [shape = 'u32[]', space=smem, size = 0x4, offset = 0x4, fixed_abs, tag = 'smem constant byte address 0x4 - core index']
  #allocation1 [shape = 'u32[144,128]{1,0:T(1,128)}', space=vmem, size = 0x12000, scoped, tag = 'internal scratch']
  %s0 = inlined_call_operand.hbm [shape: f32[64,256], index: 0, kind: input, shape index: {}]
  %s1 = inlined_call_operand.hbm [shape: f32[256,512], index: 1, kind: input, shape index: {}]
  %s2 = inlined_call_operand.vmem [shape: f32[1,512], index: 2, kind: input, shape index: {}]
  %s3 = inlined_call_operand.hbm [shape: f32[64,512], index: 3, kind: output, shape index: {}]
  %s4 = sld [smem:[#allocation0]]
  $region30: #{tpu_custom_call.1} parent=0
    _
  %s6 = ssub.s32 1, %s4
  %s7 = scalar_select 0, %s6, %s4
  $region1: #{tpu_custom_call.1} parent=0
    #allocation2 [shape = 'u8[65536]{0}', space=vmem, size = 0x10000, scoped, tag = 'input window, operand 0, single buffered']
    #allocation3 [shape = 's32[1]{0}', space=sflag, size = 0x4, scoped, tag = 'scoped memory for tpu_custom_call.1']
    #allocation4 [shape = 's32[1]{0}', space=sflag, size = 0x4, scoped, tag = 'scoped memory for tpu_custom_call.1']
    #allocation5 [shape = 'u8[524288]{0}', space=vmem, size = 0x80000, scoped, tag = 'input window, operand 1, single buffered']
    #allocation6 [shape = 's32[1]{0}', space=sflag, size = 0x4, scoped, tag = 'scoped memory for tpu_custom_call.1']
    #allocation7 [shape = 'u8[131072]{0}', space=vmem, size = 0x20000, scoped, tag = 'output window, operand 0, single buffered']
    %8 = vsyncpa [#allocation3], 0
    %9 = vsyncpa [#allocation6], 0
    %10 = vsyncpa [#allocation4], 0
    // Predicated region
    $region2: #{tpu_custom_call.1} parent=1 // pred_check
      _
    $region3: #{tpu_custom_call.1} parent=1 // pred_check_branch
      %12 = sbr.rel (0) target = $region5
    $region4: #{tpu_custom_call.1} parent=1 // pred_region
      %s14 = ssub.s32 2048, 2048
      %15 = vsyncadd [#allocation3], %s14
      %s16 = sshll.u32 [#allocation2], 4
      %s17 = int_to_ptr.vmem [resolvable:$true] %s16
      %22 = dma.hbm_to_vmem [thread:$0]  %s0, 2048, %s17, [#allocation3], 256, 256, 16
    $region5: #{tpu_custom_call.1} parent=1 // pred_fallthru
      _
    // Predicated region
    $region6: #{tpu_custom_call.1} parent=1 // pred_check
      _
    $region7: #{tpu_custom_call.1} parent=1 // pred_check_branch
      %24 = sbr.rel (0) target = $region9
    $region8: #{tpu_custom_call.1} parent=1 // pred_region
      %s26 = ssub.s32 16384, 16384
      %27 = vsyncadd [#allocation6], %s26
      %s28 = sshll.u32 [#allocation5], 4
      %s29 = int_to_ptr.vmem [resolvable:$true] %s28
      %34 = dma.hbm_to_vmem [thread:$0]  %s1, 16384, %s29, [#allocation6], 512, 512, 32
    $region9: #{tpu_custom_call.1} parent=1 // pred_fallthru
      _
    // Predicated region
    $region10: #{tpu_custom_call.1} parent=1 // pred_check
      _
    $region11: #{tpu_custom_call.1} parent=1 // pred_check_branch
      %36 = sbr.rel (0) target = $region13
    $region12: #{tpu_custom_call.1} parent=1 // pred_region
      _
    $region13: #{tpu_custom_call.1} parent=1 // pred_fallthru
      _
    // Predicated region
    $region14: #{tpu_custom_call.1} parent=1 // pred_check
      _
    $region15: #{tpu_custom_call.1} parent=1 // pred_check_branch
      %38 = sbr.rel (0) target = $region17
    $region16: #{tpu_custom_call.1} parent=1 // pred_region
      %39 = dma.done [#allocation3], 2048
    $region17: #{tpu_custom_call.1} parent=1 // pred_fallthru
      _
    // Predicated region
    $region18: #{tpu_custom_call.1} parent=1 // pred_check
      _
    $region19: #{tpu_custom_call.1} parent=1 // pred_check_branch
      %41 = sbr.rel (0) target = $region21
    $region20: #{tpu_custom_call.1} parent=1 // pred_region
      %42 = dma.done [#allocation6], 16384
    $region21: #{tpu_custom_call.1} parent=1 // pred_fallthru
      _
    %v43 = vld [vmem:[#allocation2] sm:$0xff]
    %v44 = vld [vmem:[#allocation2 + $0x8] sm:$0xff]
    %v45 = vld [vmem:[#allocation2 + $0x10] sm:$0xff]
    %v46 = vld [vmem:[#allocation2 + $0x18] sm:$0xff]
    %v47 = vld [vmem:[#allocation2 + $0x20] sm:$0xff]
    %v48 = vld [vmem:[#allocation2 + $0x28] sm:$0xff]
    %v49 = vld [vmem:[#allocation2 + $0x30] sm:$0xff]
    %v50 = vld [vmem:[#allocation2 + $0x38] sm:$0xff]
    %v51 = vld [vmem:[#allocation2 + $0x40] sm:$0xff]
    %v52 = vld [vmem:[#allocation2 + $0x48] sm:$0xff]
    %v53 = vld [vmem:[#allocation2 + $0x50] sm:$0xff]
    %v54 = vld [vmem:[#allocation2 + $0x58] sm:$0xff]
    %v55 = vld [vmem:[#allocation2 + $0x60] sm:$0xff]
    %v56 = vld [vmem:[#allocation2 + $0x68] sm:$0xff]
    %v57 = vld [vmem:[#allocation2 + $0x70] sm:$0xff]
    %v58 = vld [vmem:[#allocation2 + $0x78] sm:$0xff]
    %v59 = vld [vmem:[#allocation5] sm:$0xff]
    %v60 = vld [vmem:[#allocation5 + $0x8] sm:$0xff]
    %v61 = vld [vmem:[#allocation5 + $0x10] sm:$0xff]
    %v62 = vld [vmem:[#allocation5 + $0x18] sm:$0xff]
    %v63 = vld [vmem:[#allocation5 + $0x20] sm:$0xff]
    %v64 = vld [vmem:[#allocation5 + $0x28] sm:$0xff]
    %v65 = vld [vmem:[#allocation5 + $0x30] sm:$0xff]
    %v66 = vld [vmem:[#allocation5 + $0x38] sm:$0xff]
    %v67 = vld [vmem:[#allocation5 + $0x40] sm:$0xff]
    %v68 = vld [vmem:[#allocation5 + $0x48] sm:$0xff]
    %v69 = vld [vmem:[#allocation5 + $0x50] sm:$0xff]
    %v70 = vld [vmem:[#allocation5 + $0x58] sm:$0xff]
    %v71 = vld [vmem:[#allocation5 + $0x60] sm:$0xff]
    %v72 = vld [vmem:[#allocation5 + $0x68] sm:$0xff]
    %v73 = vld [vmem:[#allocation5 + $0x70] sm:$0xff]
    %v74 = vld [vmem:[#allocation5 + $0x78] sm:$0xff]
    %v75 = vld [vmem:[#allocation5 + $0x80] sm:$0xff]
    %v76 = vld [vmem:[#allocation5 + $0x88] sm:$0xff]
    %v77 = vld [vmem:[#allocation5 + $0x90] sm:$0xff]
    %v78 = vld [vmem:[#allocation5 + $0x98] sm:$0xff]
    %v79 = vld [vmem:[#allocation5 + $0xa0] sm:$0xff]
    %v80 = vld [vmem:[#allocation5 + $0xa8] sm:$0xff]
    %v81 = vld [vmem:[#allocation5 + $0xb0] sm:$0xff]
    %v82 = vld [vmem:[#allocation5 + $0xb8] sm:$0xff]
    %v83 = vld [vmem:[#allocation5 + $0xc0] sm:$0xff]
    %v84 = vld [vmem:[#allocation5 + $0xc8] sm:$0xff]
    %v85 = vld [vmem:[#allocation5 + $0xd0] sm:$0xff]
    %v86 = vld [vmem:[#allocation5 + $0xd8] sm:$0xff]
    %v87 = vld [vmem:[#allocation5 + $0xe0] sm:$0xff]
    %v88 = vld [vmem:[#allocation5 + $0xe8] sm:$0xff]
    %v89 = vld [vmem:[#allocation5 + $0xf0] sm:$0xff]
    %v90 = vld [vmem:[#allocation5 + $0xf8] sm:$0xff]
    %v91 = vld [vmem:[#allocation5 + $0x100] sm:$0xff]
    %v92 = vld [vmem:[#allocation5 + $0x108] sm:$0xff]
    %v93 = vld [vmem:[#allocation5 + $0x110] sm:$0xff]
    %v94 = vld [vmem:[#allocation5 + $0x118] sm:$0xff]
    %v95 = vld [vmem:[#allocation5 + $0x120] sm:$0xff]
    %v96 = vld [vmem:[#allocation5 + $0x128] sm:$0xff]
    %v97 = vld [vmem:[#allocation5 + $0x130] sm:$0xff]
    %v98 = vld [vmem:[#allocation5 + $0x138] sm:$0xff]
    %v99 = vld [vmem:[#allocation5 + $0x140] sm:$0xff]
    %v100 = vld [vmem:[#allocation5 + $0x148] sm:$0xff]
    %v101 = vld [vmem:[#allocation5 + $0x150] sm:$0xff]
    %v102 = vld [vmem:[#allocation5 + $0x158] sm:$0xff]
    %v103 = vld [vmem:[#allocation5 + $0x160] sm:$0xff]
    %v104 = vld [vmem:[#allocation5 + $0x168] sm:$0xff]
    %v105 = vld [vmem:[#allocation5 + $0x170] sm:$0xff]
    %v106 = vld [vmem:[#allocation5 + $0x178] sm:$0xff]
    %v107 = vld [vmem:[#allocation5 + $0x180] sm:$0xff]
    %v108 = vld [vmem:[#allocation5 + $0x188] sm:$0xff]
    %v109 = vld [vmem:[#allocation5 + $0x190] sm:$0xff]
    %v110 = vld [vmem:[#allocation5 + $0x198] sm:$0xff]
    %v111 = vld [vmem:[#allocation5 + $0x1a0] sm:$0xff]
    %v112 = vld [vmem:[#allocation5 + $0x1a8] sm:$0xff]
    %v113 = vld [vmem:[#allocation5 + $0x1b0] sm:$0xff]
    %v114 = vld [vmem:[#allocation5 + $0x1b8] sm:$0xff]
    %v115 = vld [vmem:[#allocation5 + $0x1c0] sm:$0xff]
    %v116 = vld [vmem:[#allocation5 + $0x1c8] sm:$0xff]
    %v117 = vld [vmem:[#allocation5 + $0x1d0] sm:$0xff]
    %v118 = vld [vmem:[#allocation5 + $0x1d8] sm:$0xff]
    %v119 = vld [vmem:[#allocation5 + $0x1e0] sm:$0xff]
    %v120 = vld [vmem:[#allocation5 + $0x1e8] sm:$0xff]
    %v121 = vld [vmem:[#allocation5 + $0x1f0] sm:$0xff]
    %v122 = vld [vmem:[#allocation5 + $0x1f8] sm:$0xff]
    %v123 = vld [vmem:[#allocation5 + $0x200] sm:$0xff]
    %v124 = vld [vmem:[#allocation5 + $0x208] sm:$0xff]
    %v125 = vld [vmem:[#allocation5 + $0x210] sm:$0xff]
    %v126 = vld [vmem:[#allocation5 + $0x218] sm:$0xff]
    %v127 = vld [vmem:[#allocation5 + $0x220] sm:$0xff]
    %v128 = vld [vmem:[#allocation5 + $0x228] sm:$0xff]
    %v129 = vld [vmem:[#allocation5 + $0x230] sm:$0xff]
    %v130 = vld [vmem:[#allocation5 + $0x238] sm:$0xff]
    %v131 = vld [vmem:[#allocation5 + $0x240] sm:$0xff]
    %v132 = vld [vmem:[#allocation5 + $0x248] sm:$0xff]
    %v133 = vld [vmem:[#allocation5 + $0x250] sm:$0xff]
    %v134 = vld [vmem:[#allocation5 + $0x258] sm:$0xff]
    %v135 = vld [vmem:[#allocation5 + $0x260] sm:$0xff]
    %v136 = vld [vmem:[#allocation5 + $0x268] sm:$0xff]
    %v137 = vld [vmem:[#allocation5 + $0x270] sm:$0xff]
    %v138 = vld [vmem:[#allocation5 + $0x278] sm:$0xff]
    %v139 = vld [vmem:[#allocation5 + $0x280] sm:$0xff]
    %v140 = vld [vmem:[#allocation5 + $0x288] sm:$0xff]
    %v141 = vld [vmem:[#allocation5 + $0x290] sm:$0xff]
    %v142 = vld [vmem:[#allocation5 + $0x298] sm:$0xff]
    %v143 = vld [vmem:[#allocation5 + $0x2a0] sm:$0xff]
    %v144 = vld [vmem:[#allocation5 + $0x2a8] sm:$0xff]
    %v145 = vld [vmem:[#allocation5 + $0x2b0] sm:$0xff]
    %v146 = vld [vmem:[#allocation5 + $0x2b8] sm:$0xff]
    %v147 = vld [vmem:[#allocation5 + $0x2c0] sm:$0xff]
    %v148 = vld [vmem:[#allocation5 + $0x2c8] sm:$0xff]
    %v149 = vld [vmem:[#allocation5 + $0x2d0] sm:$0xff]
    %v150 = vld [vmem:[#allocation5 + $0x2d8] sm:$0xff]
    %v151 = vld [vmem:[#allocation5 + $0x2e0] sm:$0xff]
    %v152 = vld [vmem:[#allocation5 + $0x2e8] sm:$0xff]
    %v153 = vld [vmem:[#allocation5 + $0x2f0] sm:$0xff]
    %v154 = vld [vmem:[#allocation5 + $0x2f8] sm:$0xff]
    %v155 = vld [vmem:[#allocation5 + $0x300] sm:$0xff]
    %v156 = vld [vmem:[#allocation5 + $0x308] sm:$0xff]
    %v157 = vld [vmem:[#allocation5 + $0x310] sm:$0xff]
    %v158 = vld [vmem:[#allocation5 + $0x318] sm:$0xff]
    %v159 = vld [vmem:[#allocation5 + $0x320] sm:$0xff]
    %v160 = vld [vmem:[#allocation5 + $0x328] sm:$0xff]
    %v161 = vld [vmem:[#allocation5 + $0x330] sm:$0xff]
    %v162 = vld [vmem:[#allocation5 + $0x338] sm:$0xff]
    %v163 = vld [vmem:[#allocation5 + $0x340] sm:$0xff]
    %v164 = vld [vmem:[#allocation5 + $0x348] sm:$0xff]
    %v165 = vld [vmem:[#allocation5 + $0x350] sm:$0xff]
    %v166 = vld [vmem:[#allocation5 + $0x358] sm:$0xff]
    %v167 = vld [vmem:[#allocation5 + $0x360] sm:$0xff]
    %v168 = vld [vmem:[#allocation5 + $0x368] sm:$0xff]
    %v169 = vld [vmem:[#allocation5 + $0x370] sm:$0xff]
    %v170 = vld [vmem:[#allocation5 + $0x378] sm:$0xff]
    %v171 = vld [vmem:[#allocation5 + $0x380] sm:$0xff]
    %v172 = vld [vmem:[#allocation5 + $0x388] sm:$0xff]
    %v173 = vld [vmem:[#allocation5 + $0x390] sm:$0xff]
    %v174 = vld [vmem:[#allocation5 + $0x398] sm:$0xff]
    %v175 = vld [vmem:[#allocation5 + $0x3a0] sm:$0xff]
    %v176 = vld [vmem:[#allocation5 + $0x3a8] sm:$0xff]
    %v177 = vld [vmem:[#allocation5 + $0x3b0] sm:$0xff]
    %v178 = vld [vmem:[#allocation5 + $0x3b8] sm:$0xff]
    %v179 = vld [vmem:[#allocation5 + $0x3c0] sm:$0xff]
    %v180 = vld [vmem:[#allocation5 + $0x3c8] sm:$0xff]
    %v181 = vld [vmem:[#allocation5 + $0x3d0] sm:$0xff]
    %v182 = vld [vmem:[#allocation5 + $0x3d8] sm:$0xff]
    %v183 = vld [vmem:[#allocation5 + $0x3e0] sm:$0xff]
    %v184 = vld [vmem:[#allocation5 + $0x3e8] sm:$0xff]
    %v185 = vld [vmem:[#allocation5 + $0x3f0] sm:$0xff]
    %v186 = vld [vmem:[#allocation5 + $0x3f8] sm:$0xff]
    %v187 = vld [vmem:[%s2] sm:$0xf]
    %v189 = vlaneseq
    %v190 = vshrl.u32 %v189, 7
    %v191 = vsub.s32 0, %v190
    %v192 = vrot.slane %v187, %v191
    %v193 = vlaneseq
    %v194 = vshrl.u32 %v193, 7
    %v195 = vsub.s32 1, %v194
    %v196 = vrot.slane %v187, %v195
    %v197 = vlaneseq
    %v198 = vshrl.u32 %v197, 7
    %v199 = vsub.s32 2, %v198
    %v200 = vrot.slane %v187, %v199
    %v201 = vlaneseq
    %v202 = vshrl.u32 %v201, 7
    %v203 = vsub.s32 3, %v202
    %v204 = vrot.slane %v187, %v203
    %209 = vmatprep.subr.mxu0 %v60
    %210 = vmatpush1.msra.mxu0 %v59
    %211 = vmatprep.subr.mxu0 %v64
    %212 = vmatpush1.msra.mxu0 %v63
    %213 = vmatprep.subr.mxu0 %v68
    %214 = vmatpush1.msra.mxu0 %v67
    %215 = vmatprep.subr.mxu0 %v72
    %216 = vmatpush1.msra.mxu0 %v71
    %217 = vmatprep.subr.mxu0 %v76
    %218 = vmatpush1.msra.mxu0 %v75
    %219 = vmatprep.subr.mxu0 %v80
    %220 = vmatpush1.msra.mxu0 %v79
    %221 = vmatprep.subr.mxu0 %v84
    %222 = vmatpush1.msra.mxu0 %v83
    %223 = vmatprep.subr.mxu0 %v88
    %224 = vmatpush1.msra.mxu0 %v87
    %225 = vmatprep.subr.mxu0 %v92
    %226 = vmatpush1.msra.mxu0 %v91
    %227 = vmatprep.subr.mxu0 %v96
    %228 = vmatpush1.msra.mxu0 %v95
    %229 = vmatprep.subr.mxu0 %v100
    %230 = vmatpush1.msra.mxu0 %v99
    %231 = vmatprep.subr.mxu0 %v104
    %232 = vmatpush1.msra.mxu0 %v103
    %233 = vmatprep.subr.mxu0 %v108
    %234 = vmatpush1.msra.mxu0 %v107
    %235 = vmatprep.subr.mxu0 %v112
    %236 = vmatpush1.msra.mxu0 %v111
    %237 = vmatprep.subr.mxu0 %v116
    %238 = vmatpush1.msra.mxu0 %v115
    %239 = vmatprep.subr.mxu0 %v120
    %240 = vmatpush1.msra.mxu0 %v119
    %241 = vmatprep.subr.mxu0 %v124
    %242 = vmatpush1.msra.mxu0 %v123
    %243 = vmatprep.subr.mxu0 %v128
    %244 = vmatpush1.msra.mxu0 %v127
    %245 = vmatprep.subr.mxu0 %v132
    %246 = vmatpush1.msra.mxu0 %v131
    %247 = vmatprep.subr.mxu0 %v136
    %248 = vmatpush1.msra.mxu0 %v135
    %249 = vmatprep.subr.mxu0 %v140
    %250 = vmatpush1.msra.mxu0 %v139
    %251 = vmatprep.subr.mxu0 %v144
    %252 = vmatpush1.msra.mxu0 %v143
    %253 = vmatprep.subr.mxu0 %v148
    %254 = vmatpush1.msra.mxu0 %v147
    %255 = vmatprep.subr.mxu0 %v152
    %256 = vmatpush1.msra.mxu0 %v151
    %257 = vmatprep.subr.mxu0 %v156
    %258 = vmatpush1.msra.mxu0 %v155
    %259 = vmatprep.subr.mxu0 %v160
    %260 = vmatpush1.msra.mxu0 %v159
    %261 = vmatprep.subr.mxu0 %v164
    %262 = vmatpush1.msra.mxu0 %v163
    %263 = vmatprep.subr.mxu0 %v168
    %264 = vmatpush1.msra.mxu0 %v167
    %265 = vmatprep.subr.mxu0 %v172
    %266 = vmatpush1.msra.mxu0 %v171
    %267 = vmatprep.subr.mxu0 %v176
    %268 = vmatpush1.msra.mxu0 %v175
    %269 = vmatprep.subr.mxu0 %v180
    %270 = vmatpush1.msra.mxu0 %v179
    %271 = vmatprep.subr.mxu0 %v184
    %272 = vmatpush1.msra.mxu0 %v183
    %273 = vmatprep.mubr.f32.mxu0 %v44
    %274 = vmatmul.mubr.f32.gmra.mrb[0].mxu0 %v43
    %v275 = vpop.f32.mrb[0].mxu0
    %v276 = vadd.f32 %v192, %v275
    %v277 = vpop.f32.mrb[0].mxu0
    %v278 = vadd.f32 %v196, %v277
    %279 = vmatprep.mubr.f32.mxu0 %v46
    %280 = vmatmul.mubr.f32.gmra.mrb[0].mxu0 %v45
    %v281 = vpop.f32.mrb[0].mxu0
    %v282 = vadd.f32 %v192, %v281
    %v283 = vpop.f32.mrb[0].mxu0
    %v284 = vadd.f32 %v196, %v283
    %285 = vmatprep.mubr.f32.mxu0 %v48
    %286 = vmatmul.mubr.f32.gmra.mrb[0].mxu0 %v47
    %v287 = vpop.f32.mrb[0].mxu0
    %v288 = vadd.f32 %v192, %v287
    %v289 = vpop.f32.mrb[0].mxu0
    %v290 = vadd.f32 %v196, %v289
    %291 = vmatprep.mubr.f32.mxu0 %v50
    %292 = vmatmul.mubr.f32.gmra.mrb[0].mxu0 %v49
    %v293 = vpop.f32.mrb[0].mxu0
    %v294 = vadd.f32 %v192, %v293
    %v295 = vpop.f32.mrb[0].mxu0
    %v296 = vadd.f32 %v196, %v295
    %297 = vmatprep.mubr.f32.mxu0 %v52
    %298 = vmatmul.mubr.f32.gmra.mrb[0].mxu0 %v51
    %v299 = vpop.f32.mrb[0].mxu0
    %v300 = vadd.f32 %v192, %v299
    %v301 = vpop.f32.mrb[0].mxu0
    %v302 = vadd.f32 %v196, %v301
    %303 = vmatprep.mubr.f32.mxu0 %v54
    %304 = vmatmul.mubr.f32.gmra.mrb[0].mxu0 %v53
    %v305 = vpop.f32.mrb[0].mxu0
    %v306 = vadd.f32 %v192, %v305
    %v307 = vpop.f32.mrb[0].mxu0
    %v308 = vadd.f32 %v196, %v307
    %309 = vmatprep.mubr.f32.mxu0 %v56
    %310 = vmatmul.mubr.f32.gmra.mrb[0].mxu0 %v55
    %v311 = vpop.f32.mrb[0].mxu0
    %v312 = vadd.f32 %v192, %v311
    %v313 = vpop.f32.mrb[0].mxu0
    %v314 = vadd.f32 %v196, %v313
    %315 = vmatprep.mubr.f32.mxu0 %v58
    %316 = vmatmul.mubr.f32.gmra.mrb[0].mxu0 %v57
    %v317 = vpop.f32.mrb[0].mxu0
    %v318 = vadd.f32 %v192, %v317
    %v319 = vpop.f32.mrb[0].mxu0
    %v320 = vadd.f32 %v196, %v319
    %321 = vdwg.mxu0
    %322 = vmatprep.subr.mxu0 %v62
    %323 = vmatpush1.msra.mxu0 %v61
    %324 = vmatprep.subr.mxu0 %v66
    %325 = vmatpush1.msra.mxu0 %v65
    %326 = vmatprep.subr.mxu0 %v70
    %327 = vmatpush1.msra.mxu0 %v69
    %328 = vmatprep.subr.mxu0 %v74
    %329 = vmatpush1.msra.mxu0 %v73
    %330 = vmatprep.subr.mxu0 %v78
    %331 = vmatpush1.msra.mxu0 %v77
    %332 = vmatprep.subr.mxu0 %v82
    %333 = vmatpush1.msra.mxu0 %v81
    %334 = vmatprep.subr.mxu0 %v86
    %335 = vmatpush1.msra.mxu0 %v85
    %336 = vmatprep.subr.mxu0 %v90
    %337 = vmatpush1.msra.mxu0 %v89
    %338 = vmatprep.subr.mxu0 %v94
    %339 = vmatpush1.msra.mxu0 %v93
    %340 = vmatprep.subr.mxu0 %v98
    %341 = vmatpush1.msra.mxu0 %v97
    %342 = vmatprep.subr.mxu0 %v102
    %343 = vmatpush1.msra.mxu0 %v101
    %344 = vmatprep.subr.mxu0 %v106
    %345 = vmatpush1.msra.mxu0 %v105
    %346 = vmatprep.subr.mxu0 %v110
    %347 = vmatpush1.msra.mxu0 %v109
    %348 = vmatprep.subr.mxu0 %v114
    %349 = vmatpush1.msra.mxu0 %v113
    %350 = vmatprep.subr.mxu0 %v118
    %351 = vmatpush1.msra.mxu0 %v117
    %352 = vmatprep.subr.mxu0 %v122
    %353 = vmatpush1.msra.mxu0 %v121
    %354 = vmatprep.subr.mxu0 %v126
    %355 = vmatpush1.msra.mxu0 %v125
    %356 = vmatprep.subr.mxu0 %v130
    %357 = vmatpush1.msra.mxu0 %v129
    %358 = vmatprep.subr.mxu0 %v134
    %359 = vmatpush1.msra.mxu0 %v133
    %360 = vmatprep.subr.mxu0 %v138
    %361 = vmatpush1.msra.mxu0 %v137
    %362 = vmatprep.subr.mxu0 %v142
    %363 = vmatpush1.msra.mxu0 %v141
    %364 = vmatprep.subr.mxu0 %v146
    %365 = vmatpush1.msra.mxu0 %v145
    %366 = vmatprep.subr.mxu0 %v150
    %367 = vmatpush1.msra.mxu0 %v149
    %368 = vmatprep.subr.mxu0 %v154
    %369 = vmatpush1.msra.mxu0 %v153
    %370 = vmatprep.subr.mxu0 %v158
    %371 = vmatpush1.msra.mxu0 %v157
    %372 = vmatprep.subr.mxu0 %v162
    %373 = vmatpush1.msra.mxu0 %v161
    %374 = vmatprep.subr.mxu0 %v166
    %375 = vmatpush1.msra.mxu0 %v165
    %376 = vmatprep.subr.mxu0 %v170
    %377 = vmatpush1.msra.mxu0 %v169
    %378 = vmatprep.subr.mxu0 %v174
    %379 = vmatpush1.msra.mxu0 %v173
    %380 = vmatprep.subr.mxu0 %v178
    %381 = vmatpush1.msra.mxu0 %v177
    %382 = vmatprep.subr.mxu0 %v182
    %383 = vmatpush1.msra.mxu0 %v181
    %384 = vmatprep.subr.mxu0 %v186
    %385 = vmatpush1.msra.mxu0 %v185
    %386 = vmatprep.mubr.f32.mxu0 %v44
    %387 = vmatmul.mubr.f32.gmra.mrb[0].mxu0 %v43
    %v388 = vpop.f32.mrb[0].mxu0
    %v389 = vadd.f32 %v200, %v388
    %v390 = vpop.f32.mrb[0].mxu0
    %v391 = vadd.f32 %v204, %v390
    %392 = vmatprep.mubr.f32.mxu0 %v46
    %393 = vmatmul.mubr.f32.gmra.mrb[0].mxu0 %v45
    %v394 = vpop.f32.mrb[0].mxu0
    %v395 = vadd.f32 %v200, %v394
    %v396 = vpop.f32.mrb[0].mxu0
    %v397 = vadd.f32 %v204, %v396
    %398 = vmatprep.mubr.f32.mxu0 %v48
    %399 = vmatmul.mubr.f32.gmra.mrb[0].mxu0 %v47
    %v400 = vpop.f32.mrb[0].mxu0
    %v401 = vadd.f32 %v200, %v400
    %v402 = vpop.f32.mrb[0].mxu0
    %v403 = vadd.f32 %v204, %v402
    %404 = vmatprep.mubr.f32.mxu0 %v50
    %405 = vmatmul.mubr.f32.gmra.mrb[0].mxu0 %v49
    %v406 = vpop.f32.mrb[0].mxu0
    %v407 = vadd.f32 %v200, %v406
    %v408 = vpop.f32.mrb[0].mxu0
    %v409 = vadd.f32 %v204, %v408
    %410 = vmatprep.mubr.f32.mxu0 %v52
    %411 = vmatmul.mubr.f32.gmra.mrb[0].mxu0 %v51
    %v412 = vpop.f32.mrb[0].mxu0
    %v413 = vadd.f32 %v200, %v412
    %v414 = vpop.f32.mrb[0].mxu0
    %v415 = vadd.f32 %v204, %v414
    %416 = vmatprep.mubr.f32.mxu0 %v54
    %417 = vmatmul.mubr.f32.gmra.mrb[0].mxu0 %v53
    %v418 = vpop.f32.mrb[0].mxu0
    %v419 = vadd.f32 %v200, %v418
    %v420 = vpop.f32.mrb[0].mxu0
    %v421 = vadd.f32 %v204, %v420
    %422 = vmatprep.mubr.f32.mxu0 %v56
    %423 = vmatmul.mubr.f32.gmra.mrb[0].mxu0 %v55
    %v424 = vpop.f32.mrb[0].mxu0
    %v425 = vadd.f32 %v200, %v424
    %v426 = vpop.f32.mrb[0].mxu0
    %v427 = vadd.f32 %v204, %v426
    %428 = vmatprep.mubr.f32.mxu0 %v58
    %429 = vmatmul.mubr.f32.gmra.mrb[0].mxu0 %v57
    %v430 = vpop.f32.mrb[0].mxu0
    %v431 = vadd.f32 %v200, %v430
    %v432 = vpop.f32.mrb[0].mxu0
    %v433 = vadd.f32 %v204, %v432
    %434 = vdwg.mxu0
    %v435 = vlaneseq
    %v436 = vand.u32 %v435, 127
    %v437 = vadd.s32 %v436, 128
    %v438 = vadd.s32 %v436, 256
    %v439 = vadd.s32 %v436, 384
    %vm440 = vcmp.ge.s32.totalorder %v436, 128
    %vm441 = vcmp.ge.s32.totalorder %v437, 128
    %vm442 = vcmp.ge.s32.totalorder %v438, 128
    %vm443 = vcmp.ge.s32.totalorder %v439, 128
    %vm444 = vcmp.lt.s32.totalorder %v436, 256
    %vm445 = vcmp.lt.s32.totalorder %v437, 256
    %vm446 = vcmp.lt.s32.totalorder %v438, 256
    %vm447 = vcmp.lt.s32.totalorder %v439, 256
    %vm448 = vmand %vm440, %vm444
    %vm449 = vmand %vm441, %vm445
    %vm450 = vmand %vm442, %vm446
    %vm451 = vmand %vm443, %vm447
    %v452 = vmax.f32 %v276, 0.0
    %v453 = vmax.f32 %v278, 0.0
    %v454 = vmax.f32 %v389, 0.0
    %v455 = vmax.f32 %v391, 0.0
    %v456 = vmax.f32 %v282, 0.0
    %v457 = vmax.f32 %v284, 0.0
    %v458 = vmax.f32 %v395, 0.0
    %v459 = vmax.f32 %v397, 0.0
    %v460 = vmax.f32 %v288, 0.0
    %v461 = vmax.f32 %v290, 0.0
    %v462 = vmax.f32 %v401, 0.0
    %v463 = vmax.f32 %v403, 0.0
    %v464 = vmax.f32 %v294, 0.0
    %v465 = vmax.f32 %v296, 0.0
    %v466 = vmax.f32 %v407, 0.0
    %v467 = vmax.f32 %v409, 0.0
    %v468 = vmax.f32 %v300, 0.0
    %v469 = vmax.f32 %v302, 0.0
    %v470 = vmax.f32 %v413, 0.0
    %v471 = vmax.f32 %v415, 0.0
    %v472 = vmax.f32 %v306, 0.0
    %v473 = vmax.f32 %v308, 0.0
    %v474 = vmax.f32 %v419, 0.0
    %v475 = vmax.f32 %v421, 0.0
    %v476 = vmax.f32 %v312, 0.0
    %v477 = vmax.f32 %v314, 0.0
    %v478 = vmax.f32 %v425, 0.0
    %v479 = vmax.f32 %v427, 0.0
    %v480 = vmax.f32 %v318, 0.0
    %v481 = vmax.f32 %v320, 0.0
    %v482 = vmax.f32 %v431, 0.0
    %v483 = vmax.f32 %v433, 0.0
    %v484 = vtanh.pop %v276
    %v485 = vtanh.pop %v278
    %v486 = vtanh.pop %v389
    %v487 = vtanh.pop %v391
    %v488 = vtanh.pop %v282
    %v489 = vtanh.pop %v284
    %v490 = vtanh.pop %v395
    %v491 = vtanh.pop %v397
    %v492 = vtanh.pop %v288
    %v493 = vtanh.pop %v290
    %v494 = vtanh.pop %v401
    %v495 = vtanh.pop %v403
    %v496 = vtanh.pop %v294
    %v497 = vtanh.pop %v296
    %v498 = vtanh.pop %v407
    %v499 = vtanh.pop %v409
    %v500 = vtanh.pop %v300
    %v501 = vtanh.pop %v302
    %v502 = vtanh.pop %v413
    %v503 = vtanh.pop %v415
    %v504 = vtanh.pop %v306
    %v505 = vtanh.pop %v308
    %v506 = vtanh.pop %v419
    %v507 = vtanh.pop %v421
    %v508 = vtanh.pop %v312
    %v509 = vtanh.pop %v314
    %v510 = vtanh.pop %v425
    %v511 = vtanh.pop %v427
    %v512 = vtanh.pop %v318
    %v513 = vtanh.pop %v320
    %v514 = vtanh.pop %v431
    %v515 = vtanh.pop %v433
    %v516 = vsel %vm448, %v452, %v484
    %v517 = vsel %vm449, %v453, %v485
    %v518 = vsel %vm450, %v454, %v486
    %v519 = vsel %vm451, %v455, %v487
    %v520 = vsel %vm448, %v456, %v488
    %v521 = vsel %vm449, %v457, %v489
    %v522 = vsel %vm450, %v458, %v490
    %v523 = vsel %vm451, %v459, %v491
    %v524 = vsel %vm448, %v460, %v492
    %v525 = vsel %vm449, %v461, %v493
    %v526 = vsel %vm450, %v462, %v494
    %v527 = vsel %vm451, %v463, %v495
    %v528 = vsel %vm448, %v464, %v496
    %v529 = vsel %vm449, %v465, %v497
    %v530 = vsel %vm450, %v466, %v498
    %v531 = vsel %vm451, %v467, %v499
    %v532 = vsel %vm448, %v468, %v500
    %v533 = vsel %vm449, %v469, %v501
    %v534 = vsel %vm450, %v470, %v502
    %v535 = vsel %vm451, %v471, %v503
    %v536 = vsel %vm448, %v472, %v504
    %v537 = vsel %vm449, %v473, %v505
    %v538 = vsel %vm450, %v474, %v506
    %v539 = vsel %vm451, %v475, %v507
    %v540 = vsel %vm448, %v476, %v508
    %v541 = vsel %vm449, %v477, %v509
    %v542 = vsel %vm450, %v478, %v510
    %v543 = vsel %vm451, %v479, %v511
    %v544 = vsel %vm448, %v480, %v512
    %v545 = vsel %vm449, %v481, %v513
    %v546 = vsel %vm450, %v482, %v514
    %v547 = vsel %vm451, %v483, %v515
    %548 = vst [vmem:[#allocation7] sm:$0xff] %v516
    %549 = vst [vmem:[#allocation7 + $0x8] sm:$0xff] %v517
    %550 = vst [vmem:[#allocation7 + $0x10] sm:$0xff] %v518
    %551 = vst [vmem:[#allocation7 + $0x18] sm:$0xff] %v519
    %552 = vst [vmem:[#allocation7 + $0x20] sm:$0xff] %v520
    %553 = vst [vmem:[#allocation7 + $0x28] sm:$0xff] %v521
    %554 = vst [vmem:[#allocation7 + $0x30] sm:$0xff] %v522
    %555 = vst [vmem:[#allocation7 + $0x38] sm:$0xff] %v523
    %556 = vst [vmem:[#allocation7 + $0x40] sm:$0xff] %v524
    %557 = vst [vmem:[#allocation7 + $0x48] sm:$0xff] %v525
    %558 = vst [vmem:[#allocation7 + $0x50] sm:$0xff] %v526
    %559 = vst [vmem:[#allocation7 + $0x58] sm:$0xff] %v527
    %560 = vst [vmem:[#allocation7 + $0x60] sm:$0xff] %v528
    %561 = vst [vmem:[#allocation7 + $0x68] sm:$0xff] %v529
    %562 = vst [vmem:[#allocation7 + $0x70] sm:$0xff] %v530
    %563 = vst [vmem:[#allocation7 + $0x78] sm:$0xff] %v531
    %564 = vst [vmem:[#allocation7 + $0x80] sm:$0xff] %v532
    %565 = vst [vmem:[#allocation7 + $0x88] sm:$0xff] %v533
    %566 = vst [vmem:[#allocation7 + $0x90] sm:$0xff] %v534
    %567 = vst [vmem:[#allocation7 + $0x98] sm:$0xff] %v535
    %568 = vst [vmem:[#allocation7 + $0xa0] sm:$0xff] %v536
    %569 = vst [vmem:[#allocation7 + $0xa8] sm:$0xff] %v537
    %570 = vst [vmem:[#allocation7 + $0xb0] sm:$0xff] %v538
    %571 = vst [vmem:[#allocation7 + $0xb8] sm:$0xff] %v539
    %572 = vst [vmem:[#allocation7 + $0xc0] sm:$0xff] %v540
    %573 = vst [vmem:[#allocation7 + $0xc8] sm:$0xff] %v541
    %574 = vst [vmem:[#allocation7 + $0xd0] sm:$0xff] %v542
    %575 = vst [vmem:[#allocation7 + $0xd8] sm:$0xff] %v543
    %576 = vst [vmem:[#allocation7 + $0xe0] sm:$0xff] %v544
    %577 = vst [vmem:[#allocation7 + $0xe8] sm:$0xff] %v545
    %578 = vst [vmem:[#allocation7 + $0xf0] sm:$0xff] %v546
    %579 = vst [vmem:[#allocation7 + $0xf8] sm:$0xff] %v547
    // Predicated region
    $region22: #{tpu_custom_call.1} parent=1 // pred_check
      _
    $region23: #{tpu_custom_call.1} parent=1 // pred_check_branch
      %581 = sbr.rel (0) target = $region25
    $region24: #{tpu_custom_call.1} parent=1 // pred_region
      %s583 = ssub.s32 4096, 4096
      %584 = vsyncadd [#allocation4], %s583
      %s585 = sshll.u32 [#allocation7], 4
      %s586 = int_to_ptr.vmem [resolvable:$true] %s585
      %591 = dma.vmem_to_hbm [thread:$0]  %s586, 4096, %s3, [#allocation4], 512, 512, 32
    $region25: #{tpu_custom_call.1} parent=1 // pred_fallthru
      _
    // Predicated region
    $region26: #{tpu_custom_call.1} parent=1 // pred_check
      _
    $region27: #{tpu_custom_call.1} parent=1 // pred_check_branch
      %593 = sbr.rel (0) target = $region29
    $region28: #{tpu_custom_call.1} parent=1 // pred_region
      %594 = dma.done [#allocation4], 4096
    $region29: #{tpu_custom_call.1} parent=1 // pred_fallthru
      _
    %595 = vsyncpa [#allocation3], 1
    %596 = vsyncpa [#allocation6], 1
    %597 = vsyncpa [#allocation4], 1

</llo_original>
